<compile_context>
chip_gen: v6e
topology: v6e:2x2x1
jax: 0.10.0
libtpu: 0.0.40
codegen_flags: <defaults>
</compile_context>

<pallas_src>
import functools
import math

import jax
import jax.numpy as jnp
from jax.experimental import pallas as pl
from jax.experimental.pallas import tpu as pltpu

_NEG_INF = -1e9  # finite "minus infinity", matches the PyTorch additive-mask convention
_VMEM_LIMIT = 48 * 1024 * 1024  # leave headroom even on v7x's 64 MiB/TC


# ----------------------------------------------------------------------------
# helpers
# ----------------------------------------------------------------------------
def _pick_tile(dim, desired, align):
    """Largest tile <= desired that divides `dim` and is a multiple of `align`,
    falling back to the full dim (a full-extent block is always legal)."""
    if dim <= desired:
        return dim
    t = (min(desired, dim) // align) * align
    while t >= align:
        if dim % t == 0:
            return t
        t -= align
    return dim


def _largest_divisor_leq(n, cap):
    d = max(1, min(n, cap))
    while n % d != 0:
        d -= 1
    return d


# ----------------------------------------------------------------------------
# Kernel 1: tiled dense projection  y = x @ W + b  (qkv_proj and out_proj)
# ----------------------------------------------------------------------------
def _linear_single_kernel(x_ref, w_ref, b_ref, o_ref):
    # Whole reduction in one step: no accumulator revisits, single lane-dense store.
    o_ref[...] = (jnp.dot(x_ref[...], w_ref[...],
                          preferred_element_type=jnp.float32)
                  + b_ref[...]).astype(o_ref.dtype)


def _linear_multik_kernel(x_ref, w_ref, b_ref, o_ref, acc_ref):
    @pl.when(pl.program_id(2) == 0)
    def _init():
        acc_ref[...] = jnp.zeros_like(acc_ref)

    acc_ref[...] += jnp.dot(x_ref[...], w_ref[...],
                            preferred_element_type=jnp.float32)

    @pl.when(pl.program_id(2) == pl.num_programs(2) - 1)
    def _finalize():
        o_ref[...] = (acc_ref[...] + b_ref[...]).astype(o_ref.dtype)


def linear(x2d, w, b, *, out_dtype=None, tm=256, tn=512, tk_threshold=2048):
    """x2d: (N, Din), w: (Din, Dout), b: (1, Dout) -> (N, Dout) out_dtype."""
    N, Din = x2d.shape
    Dout = w.shape[1]
    out_dtype = x2d.dtype if out_dtype is None else out_dtype
    tm = _pick_tile(N, tm, 8)
    tn = _pick_tile(Dout, tn, 128)

    bytes_accessed = (N * Din * x2d.dtype.itemsize
                      + Din * Dout * w.dtype.itemsize
                      + N * Dout * jnp.dtype(out_dtype).itemsize
                      + Dout * b.dtype.itemsize)
    cost = pl.CostEstimate(flops=2 * N * Din * Dout, transcendentals=0,
                           bytes_accessed=int(bytes_accessed))

    if Din <= tk_threshold:
        # Collapse the reduction axis: fewer grid steps, no f32 scratch.
        grid = (N // tm, Dout // tn)
        return pl.pallas_call(
            _linear_single_kernel,
            out_shape=jax.ShapeDtypeStruct((N, Dout), out_dtype),
            grid_spec=pltpu.PrefetchScalarGridSpec(
                num_scalar_prefetch=0,
                grid=grid,
                in_specs=[
                    pl.BlockSpec((tm, Din), lambda i, j: (i, 0)),
                    pl.BlockSpec((Din, tn), lambda i, j: (0, j)),
                    pl.BlockSpec((1, tn), lambda i, j: (0, j)),
                ],
                out_specs=pl.BlockSpec((tm, tn), lambda i, j: (i, j)),
            ),
            compiler_params=pltpu.CompilerParams(
                dimension_semantics=("parallel", "parallel"),
                vmem_limit_bytes=_VMEM_LIMIT,
            ),
            cost_estimate=cost,
        )(x2d, w, b)

    tk = _pick_tile(Din, 512, 128)
    grid = (N // tm, Dout // tn, Din // tk)
    return pl.pallas_call(
        _linear_multik_kernel,
        out_shape=jax.ShapeDtypeStruct((N, Dout), out_dtype),
        grid_spec=pltpu.PrefetchScalarGridSpec(
            num_scalar_prefetch=0,
            grid=grid,
            in_specs=[
                pl.BlockSpec((tm, tk), lambda i, j, k: (i, k)),
                pl.BlockSpec((tk, tn), lambda i, j, k: (k, j)),
                pl.BlockSpec((1, tn), lambda i, j, k: (0, j)),
            ],
            out_specs=pl.BlockSpec((tm, tn), lambda i, j, k: (i, j)),
            scratch_shapes=[pltpu.VMEM((tm, tn), jnp.float32)],
        ),
        compiler_params=pltpu.CompilerParams(
            dimension_semantics=("parallel", "parallel", "arbitrary"),
            vmem_limit_bytes=_VMEM_LIMIT,
        ),
        cost_estimate=cost,
    )(x2d, w, b)


# ----------------------------------------------------------------------------
# Kernel 2: flash-style scaled dot-product attention (online softmax)
#   grid = (head-blocks, q-tiles, kv-tiles), kv is the reduction axis.
# ----------------------------------------------------------------------------
def _flash_attn_kernel(*refs, scale, causal, has_mask, tq, tk):
    if has_mask:
        q_ref, k_ref, v_ref, mask_ref, o_ref, m_scr, l_scr, acc_scr = refs
    else:
        q_ref, k_ref, v_ref, o_ref, m_scr, l_scr, acc_scr = refs
        mask_ref = None

    qi = pl.program_id(1)
    ki = pl.program_id(2)

    @pl.when(ki == 0)
    def _init():
        m_scr[...] = jnp.full_like(m_scr, -jnp.inf)
        l_scr[...] = jnp.zeros_like(l_scr)
        acc_scr[...] = jnp.zeros_like(acc_scr)

    def _update(apply_causal_mask):
        # Fold 1/sqrt(d_k) into Q: VPU mul on (hb, tq, d_k), not (hb, tq, tk).
        q = q_ref[...] * scale              # (Hb, tq, d_k)
        k = k_ref[...]                      # (Hb, tk, d_k)
        v = v_ref[...]                      # (Hb, tk, d_k)
        # Batched QK^T without an explicit transpose (contracts the last dims).
        s = jnp.einsum("hqd,hkd->hqk", q, k,
                       preferred_element_type=jnp.float32)            # (Hb, tq, tk)
        if mask_ref is not None:
            s = s + mask_ref[...][None, :, :]       # additive (tq, tk) mask tile
        if apply_causal_mask:
            row = qi * tq + jax.lax.broadcasted_iota(jnp.int32, (tq, tk), 0)
            col = ki * tk + jax.lax.broadcasted_iota(jnp.int32, (tq, tk), 1)
            s = jnp.where((row >= col)[None, :, :], s, _NEG_INF)

        m_prev = m_scr[...]
        m_new = jnp.maximum(m_prev, jnp.max(s, axis=-1, keepdims=True))
        alpha = jnp.exp(m_prev - m_new)
        p = jnp.exp(s - m_new)
        l_scr[...] = alpha * l_scr[...] + jnp.sum(p, axis=-1, keepdims=True)
        acc_scr[...] = alpha * acc_scr[...] + jnp.einsum(
            "hqk,hkd->hqd", p.astype(v.dtype), v,
            preferred_element_type=jnp.float32)
        m_scr[...] = m_new

    if causal:
        q_first = qi * tq
        q_last = qi * tq + (tq - 1)
        kv_first = ki * tk
        kv_last = ki * tk + (tk - 1)
        # Entirely at/below the diagonal: no causal mask VALU work needed.
        @pl.when(kv_last <= q_first)
        def _():
            _update(False)

        # Tile intersects the diagonal: apply the in-kernel causal mask.
        @pl.when(jnp.logical_and(kv_last > q_first, kv_first <= q_last))
        def _():
            _update(True)
        # Entirely above the diagonal: skipped (compute gated here, K/V DMA
        # skipped via the clamped index_maps in flash_attention()).
    else:
        _update(False)

    @pl.when(ki == pl.num_programs(2) - 1)
    def _finalize():
        # NOTE: a fully masked row (impossible with causal masking) gives the
        # uniform average of V, matching softmax-of-all(-1e9), not NaN.
        o_ref[...] = (acc_scr[...] *
                      pl.reciprocal(l_scr[...], approx=True)).astype(o_ref.dtype)


def flash_attention(q, k, v, *, causal=False, mask=None, out_dtype=None,
                    heads_per_block=8, q_tile=256, kv_tile=256):
    """q, k, v: (BH, L, d_k); mask: None or additive (L, L) -> (BH, L, d_k)."""
    BH, L, d_k = q.shape
    out_dtype = q.dtype if out_dtype is None else out_dtype
    hb = _largest_divisor_leq(BH, heads_per_block)
    tq = _pick_tile(L, q_tile, 8)
    tk = _pick_tile(L, kv_tile, 128)
    grid = (BH // hb, L // tq, L // tk)
    scale = 1.0 / math.sqrt(d_k)

    if causal:
        # Clamp the kv block index so steps above the diagonal keep the last
        # valid block resident: Pallas skips the re-DMA when the index repeats.
        def kv_index(b, i, j):
            return (b, jnp.minimum(j, (i * tq + tq - 1) // tk), 0)

        def mask_index(b, i, j):
            return (i, jnp.minimum(j, (i * tq + tq - 1) // tk))
    else:
        def kv_index(b, i, j):
            return (b, j, 0)

        def mask_index(b, i, j):
            return (i, j)

    in_specs = [
        pl.BlockSpec((hb, tq, d_k), lambda b, i, j: (b, i, 0)),
        pl.BlockSpec((hb, tk, d_k), kv_index),
        pl.BlockSpec((hb, tk, d_k), kv_index),
    ]
    inputs = [q, k, v]
    has_mask = mask is not None
    if has_mask:
        in_specs.append(pl.BlockSpec((tq, tk), mask_index))
        inputs.append(mask.astype(jnp.float32))

    kernel = functools.partial(_flash_attn_kernel, scale=scale, causal=causal,
                               has_mask=has_mask, tq=tq, tk=tk)

    # Cost estimate reflecting K/V re-reads (one pass per q-tile) and the
    # causal skip fraction; advisory only.
    causal_frac = 0.5 if causal else 1.0
    n_qt = L // tq
    itemsize = q.dtype.itemsize
    cost = pl.CostEstimate(
        flops=int(4 * BH * L * L * d_k * causal_frac),
        transcendentals=int(BH * L * L * causal_frac),
        bytes_accessed=int(BH * L * d_k * itemsize
                           + BH * L * d_k * jnp.dtype(out_dtype).itemsize
                           + causal_frac * n_qt * 2 * BH * L * d_k * itemsize),
    )

    return pl.pallas_call(
        kernel,
        out_shape=jax.ShapeDtypeStruct((BH, L, d_k), out_dtype),
        grid_spec=pltpu.PrefetchScalarGridSpec(
            num_scalar_prefetch=0,
            grid=grid,
            in_specs=in_specs,
            out_specs=pl.BlockSpec((hb, tq, d_k), lambda b, i, j: (b, i, 0)),
            scratch_shapes=[
                pltpu.VMEM((hb, tq, 1), jnp.float32),     # running max m
                pltpu.VMEM((hb, tq, 1), jnp.float32),     # running sum l
                pltpu.VMEM((hb, tq, d_k), jnp.float32),   # output accumulator
            ],
        ),
        compiler_params=pltpu.CompilerParams(
            dimension_semantics=("parallel", "parallel", "arbitrary"),
            vmem_limit_bytes=_VMEM_LIMIT,
        ),
        cost_estimate=cost,
    )(*inputs)


# ----------------------------------------------------------------------------
# MultiHeadAttention forward (glue in plain JAX, hot paths in Pallas kernels)
# ----------------------------------------------------------------------------
def multi_head_attention(x, params, num_heads, *, mask=None, causal=False,
                         compute_dtype=jnp.bfloat16):
    """x: (B, L, d_model) float32.
    mask: None or additive (L, L) float32 (broadcast over batch & heads).
    causal: generate the causal mask in-kernel (no (L, L) array in HBM).
    compute_dtype: dtype of the matmul operands (default bfloat16, MXU-native on
                   v6e/v7x); accumulation and softmax statistics stay float32.
                   The final output is always float32."""
    B, L, D = x.shape
    d_k = D // num_heads
    cd = compute_dtype

    # --- qkv projection (Pallas linear, emits compute dtype directly) ---
    x2d = x.reshape(B * L, D).astype(cd)
    qkv = linear(x2d, params["w_qkv"].astype(cd), params["b_qkv"],
                 out_dtype=cd)                               # (B*L, 3D) cd
    qkv = qkv.reshape(B, L, 3, num_heads, d_k)

    # split heads: (B, L, 3, H, d_k) -> three (B*H, L, d_k)   (done at cd width)
    def _heads(i):
        return (qkv[:, :, i]
                .transpose(0, 2, 1, 3)
                .reshape(B * num_heads, L, d_k))

    qh, kh, vh = _heads(0), _heads(1), _heads(2)

    # --- attention (flash, online softmax, head-batched blocks) ---
    y = flash_attention(qh, kh, vh, causal=causal, mask=mask,
                        out_dtype=cd)                        # (B*H, L, d_k) cd

    # merge heads: (B*H, L, d_k) -> (B*L, D)
    y = y.reshape(B, num_heads, L, d_k).transpose(0, 2, 1, 3).reshape(B * L, D)

    # --- output projection (Pallas linear, f32 output to match the module) ---
    out = linear(y, params["w_out"].astype(cd), params["b_out"],
                 out_dtype=jnp.float32)
    return out.reshape(B, L, D)


def init_params(key, d_model):
    """Deterministic init mimicking nn.Linear (uniform +/- 1/sqrt(fan_in))."""
    k1, k2, k3, k4 = jax.random.split(key, 4)
    bound = 1.0 / math.sqrt(d_model)
    return {
        "w_qkv": jax.random.uniform(k1, (d_model, 3 * d_model), jnp.float32, -bound, bound),
        "b_qkv": jax.random.uniform(k2, (1, 3 * d_model), jnp.float32, -bound, bound),
        "w_out": jax.random.uniform(k3, (d_model, d_model), jnp.float32, -bound, bound),
        "b_out": jax.random.uniform(k4, (1, d_model), jnp.float32, -bound, bound),
    }


# ----------------------------------------------------------------------------
# pure-JAX reference (mirrors the PyTorch module, eval mode)
# ----------------------------------------------------------------------------
def _reference_mha(x, params, num_heads, *, causal=False, mask=None):
    B, L, D = x.shape
    d_k = D // num_heads
    qkv = x.reshape(B * L, D) @ params["w_qkv"] + params["b_qkv"]
    q, k, v = jnp.split(qkv.reshape(B, L, 3 * D), 3, axis=-1)

    def split(t):
        return t.reshape(B, L, num_heads, d_k).transpose(0, 2, 1, 3)

    q, k, v = map(split, (q, k, v))
    s = jnp.einsum("bhqd,bhkd->bhqk", q, k) / math.sqrt(d_k)
    if causal:
        cm = jnp.where(jnp.tril(jnp.ones((L, L), bool)), 0.0, _NEG_INF)
        s = s + cm
    if mask is not None:
        s = s + mask
    p = jax.nn.softmax(s, axis=-1)
    y = jnp.einsum("bhqk,bhkd->bhqd", p, v)
    y = y.transpose(0, 2, 1, 3).reshape(B * L, D)
    out = y @ params["w_out"] + params["b_out"]
    return out.reshape(B, L, D)


if __name__ == "__main__":
    key = jax.random.PRNGKey(0)
    kx, kp = jax.random.split(key)

    B, L, d_model, num_heads = 2, 8, 32, 4
    x = jax.random.normal(kx, (B, L, d_model), dtype=jnp.float32)
    params = init_params(kp, d_model)

    ref = _reference_mha(x, params, num_heads, causal=True)

    # (1) f32 compute path, in-kernel causal mask (tight correctness check)
    y_f32 = jax.block_until_ready(
        multi_head_attention(x, params, num_heads, causal=True,
                             compute_dtype=jnp.float32))
    assert y_f32.shape == (B, L, d_model)
    err = float(jnp.max(jnp.abs(y_f32 - ref)))
    assert err < 1e-2, f"f32 causal path max abs err {err}"

    # (2) default bf16 compute path (MXU-native operands), in-kernel causal mask
    y_bf16 = jax.block_until_ready(
        multi_head_attention(x, params, num_heads, causal=True))
    err2 = float(jnp.max(jnp.abs(y_bf16 - ref)))
    assert err2 < 1e-1, f"bf16 causal path max abs err {err2}"

    # (3) explicit additive (L, L) mask path (tiled through a BlockSpec), f32
    add_mask = jnp.where(jnp.tril(jnp.ones((L, L), bool)), 0.0, _NEG_INF).astype(jnp.float32)
    y_mask = jax.block_until_ready(
        multi_head_attention(x, params, num_heads, mask=add_mask,
                             compute_dtype=jnp.float32))
    err3 = float(jnp.max(jnp.abs(y_mask - ref)))
    assert err3 < 1e-2, f"explicit-mask path max abs err {err3}"

    print("KERNEL_OK")
</pallas_src>

<mosaic_0001>
module attributes {stable_mosaic.version = 11 : i64} {
  func.func @_linear_single_kernel(%arg0: i32, %arg1: i32, %arg2: memref<16x32xf32, #tpu.memory_space<vmem>>, %arg3: memref<32x96xf32, #tpu.memory_space<vmem>>, %arg4: memref<1x96xf32, #tpu.memory_space<vmem>>, %arg5: memref<16x96xf32, #tpu.memory_space<vmem>>) attributes {dimension_semantics = [#tpu.dimension_semantics<parallel>, #tpu.dimension_semantics<parallel>], iteration_bounds = array<i64: 1, 1>, scalar_prefetch = 0 : i64, scratch_operands = 0 : i64, tpu.core_type = #tpu.core_type<tc>, window_params = [{transform_indices = @transform_0, window_bounds = array<i64: 16, 32>}, {transform_indices = @transform_1, window_bounds = array<i64: 32, 96>}, {transform_indices = @transform_2, window_bounds = array<i64: 1, 96>}, {transform_indices = @transform_3, window_bounds = array<i64: 16, 96>}]} {
    %c0 = arith.constant 0 : index
    %c0_0 = arith.constant 0 : index
    %0 = vector.load %arg2[%c0, %c0_0] : memref<16x32xf32, #tpu.memory_space<vmem>>, vector<16x32xf32>
    %c0_1 = arith.constant 0 : index
    %c0_2 = arith.constant 0 : index
    %1 = vector.load %arg3[%c0_1, %c0_2] : memref<32x96xf32, #tpu.memory_space<vmem>>, vector<32x96xf32>
    %cst = arith.constant dense<0.000000e+00> : vector<16x96xf32>
    %2 = tpu.matmul %0, %1, %cst {dimension_numbers = #tpu.dot_dimension_numbers<[1], [0], [0], [1], [0, 0, 1, 1], [], []>} : vector<16x32xf32>, vector<32x96xf32>, vector<16x96xf32> -> vector<16x96xf32>
    %c0_3 = arith.constant 0 : index
    %c0_4 = arith.constant 0 : index
    %3 = vector.load %arg4[%c0_3, %c0_4] : memref<1x96xf32, #tpu.memory_space<vmem>>, vector<1x96xf32>
    %4 = vector.broadcast %3 : vector<1x96xf32> to vector<16x96xf32>
    %5 = arith.addf %2, %4 : vector<16x96xf32>
    %c0_5 = arith.constant 0 : index
    %c0_6 = arith.constant 0 : index
    %6 = vector.load %arg5[%c0_5, %c0_6] : memref<16x96xf32, #tpu.memory_space<vmem>>, vector<16x96xf32>
    tpu.vector_store %arg5[%c0_5, %c0_6], %5 {strides = array<i32>} : memref<16x96xf32, #tpu.memory_space<vmem>>, vector<16x96xf32>,
    return
  }
  func.func @transform_0(%arg0: i32, %arg1: i32) -> (i32, i32) {
    %c0_i32 = arith.constant 0 : i32
    %c0_i32_0 = arith.constant 0 : i32
    return %arg0, %c0_i32 : i32, i32
  }
  func.func @transform_1(%arg0: i32, %arg1: i32) -> (i32, i32) {
    %c0_i32 = arith.constant 0 : i32
    %c0_i32_0 = arith.constant 0 : i32
    return %c0_i32, %arg1 : i32, i32
  }
  func.func @transform_2(%arg0: i32, %arg1: i32) -> (i32, i32) {
    %c0_i32 = arith.constant 0 : i32
    %c0_i32_0 = arith.constant 0 : i32
    return %c0_i32, %arg1 : i32, i32
  }
  func.func @transform_3(%arg0: i32, %arg1: i32) -> (i32, i32) {
    %c0_i32 = arith.constant 0 : i32
    return %arg0, %arg1 : i32, i32
  }
}

</mosaic_0001>

<llo_original>
// kernel: tpu_custom_call.1
$region0: #{tpu_custom_call.1}
  #allocation0 [shape = 'u32[]', space=smem, size = 0x4, offset = 0x4, fixed_abs, tag = 'smem constant byte address 0x4 - core index']
  #allocation1 [shape = 'u32[144,128]{1,0:T(1,128)}', space=vmem, size = 0x12000, scoped, tag = 'internal scratch']
  %s0 = inlined_call_operand.hbm [shape: f32[16,32], index: 0, kind: input, shape index: {}]
  %s1 = inlined_call_operand.hbm [shape: f32[32,96], index: 1, kind: input, shape index: {}]
  %s2 = inlined_call_operand.vmem [shape: f32[1,96], index: 2, kind: input, shape index: {}]
  %s3 = inlined_call_operand.hbm [shape: f32[16,96], index: 3, kind: output, shape index: {}]
  %s4 = sld [smem:[#allocation0]]
  $region30: #{tpu_custom_call.1} parent=0
    _
  %s6 = ssub.s32 1, %s4
  %s7 = scalar_select 0, %s6, %s4
  $region1: #{tpu_custom_call.1} parent=0
    #allocation2 [shape = 'u8[8192]{0}', space=vmem, size = 0x2000, scoped, tag = 'input window, operand 0, single buffered']
    #allocation3 [shape = 's32[1]{0}', space=sflag, size = 0x4, scoped, tag = 'scoped memory for tpu_custom_call.1']
    #allocation4 [shape = 's32[1]{0}', space=sflag, size = 0x4, scoped, tag = 'scoped memory for tpu_custom_call.1']
    #allocation5 [shape = 'u8[16384]{0}', space=vmem, size = 0x4000, scoped, tag = 'input window, operand 1, single buffered']
    #allocation6 [shape = 's32[1]{0}', space=sflag, size = 0x4, scoped, tag = 'scoped memory for tpu_custom_call.1']
    #allocation7 [shape = 'u8[8192]{0}', space=vmem, size = 0x2000, scoped, tag = 'output window, operand 0, single buffered']
    %8 = vsyncpa [#allocation3], 0
    %9 = vsyncpa [#allocation6], 0
    %10 = vsyncpa [#allocation4], 0
    // Predicated region
    $region2: #{tpu_custom_call.1} parent=1 // pred_check
      _
    $region3: #{tpu_custom_call.1} parent=1 // pred_check_branch
      %12 = sbr.rel (0) target = $region5
    $region4: #{tpu_custom_call.1} parent=1 // pred_region
      %s14 = ssub.s32 256, 256
      %15 = vsyncadd [#allocation3], %s14
      %s16 = sshll.u32 [#allocation2], 4
      %s17 = int_to_ptr.vmem [resolvable:$true] %s16
      %22 = dma.hbm_to_vmem [thread:$0]  %s0, 256, %s17, [#allocation3], 128, 128, 8
    $region5: #{tpu_custom_call.1} parent=1 // pred_fallthru
      _
    // Predicated region
    $region6: #{tpu_custom_call.1} parent=1 // pred_check
      _
    $region7: #{tpu_custom_call.1} parent=1 // pred_check_branch
      %24 = sbr.rel (0) target = $region9
    $region8: #{tpu_custom_call.1} parent=1 // pred_region
      %s26 = ssub.s32 512, 512
      %27 = vsyncadd [#allocation6], %s26
      %s28 = sshll.u32 [#allocation5], 4
      %s29 = int_to_ptr.vmem [resolvable:$true] %s28
      %34 = dma.hbm_to_vmem [thread:$0]  %s1, 512, %s29, [#allocation6], 128, 128, 8
    $region9: #{tpu_custom_call.1} parent=1 // pred_fallthru
      _
    // Predicated region
    $region10: #{tpu_custom_call.1} parent=1 // pred_check
      _
    $region11: #{tpu_custom_call.1} parent=1 // pred_check_branch
      %36 = sbr.rel (0) target = $region13
    $region12: #{tpu_custom_call.1} parent=1 // pred_region
      _
    $region13: #{tpu_custom_call.1} parent=1 // pred_fallthru
      _
    // Predicated region
    $region14: #{tpu_custom_call.1} parent=1 // pred_check
      _
    $region15: #{tpu_custom_call.1} parent=1 // pred_check_branch
      %38 = sbr.rel (0) target = $region17
    $region16: #{tpu_custom_call.1} parent=1 // pred_region
      %39 = dma.done [#allocation3], 256
    $region17: #{tpu_custom_call.1} parent=1 // pred_fallthru
      _
    // Predicated region
    $region18: #{tpu_custom_call.1} parent=1 // pred_check
      _
    $region19: #{tpu_custom_call.1} parent=1 // pred_check_branch
      %41 = sbr.rel (0) target = $region21
    $region20: #{tpu_custom_call.1} parent=1 // pred_region
      %42 = dma.done [#allocation6], 512
    $region21: #{tpu_custom_call.1} parent=1 // pred_fallthru
      _
    %v43 = vld [vmem:[#allocation2] sm:$0xff]
    %v44 = vld [vmem:[#allocation2 + $0x8] sm:$0xff]
    %v45 = vld [vmem:[#allocation5] sm:$0xff]
    %v46 = vld [vmem:[#allocation5 + $0x8] sm:$0xff]
    %v47 = vld [vmem:[#allocation5 + $0x10] sm:$0xff]
    %v48 = vld [vmem:[#allocation5 + $0x18] sm:$0xff]
    %v49 = vld [vmem:[%s2] sm:$0x1]
    %v51 = vlaneseq
    %v52 = vshrl.u32 %v51, 7
    %v53 = vsub.s32 0, %v52
    %v54 = vrot.slane %v49, %v53
    %vm56 = vcmask 261120
    %v58 = vsel %vm56, %v43, 0
    %v61 = vsel %vm56, %v44, 0
    %63 = vmatprep.subr.mxu0 0.0
    %64 = vmatpush1.msra.mxu0 0.0
    %65 = vmatprep.subr.mxu0 0.0
    %66 = vmatpush1.msra.mxu0 0.0
    %67 = vmatprep.subr.mxu0 0.0
    %68 = vmatpush1.msra.mxu0 0.0
    %69 = vmatprep.subr.mxu0 0.0
    %70 = vmatpush1.msra.mxu0 0.0
    %71 = vmatprep.subr.mxu0 0.0
    %72 = vmatpush1.msra.mxu0 0.0
    %73 = vmatprep.subr.mxu0 0.0
    %74 = vmatpush1.msra.mxu0 0.0
    %75 = vmatprep.subr.mxu0 0.0
    %76 = vmatpush1.msra.mxu0 0.0
    %77 = vmatprep.subr.mxu0 0.0
    %78 = vmatpush1.msra.mxu0 0.0
    %79 = vmatprep.subr.mxu0 0.0
    %80 = vmatpush1.msra.mxu0 0.0
    %81 = vmatprep.subr.mxu0 0.0
    %82 = vmatpush1.msra.mxu0 0.0
    %83 = vmatprep.subr.mxu0 0.0
    %84 = vmatpush1.msra.mxu0 0.0
    %85 = vmatprep.subr.mxu0 0.0
    %86 = vmatpush1.msra.mxu0 0.0
    %87 = vmatprep.subr.mxu0 0.0
    %88 = vmatpush1.msra.mxu0 %v48
    %89 = vmatprep.subr.mxu0 0.0
    %90 = vmatpush1.msra.mxu0 %v47
    %91 = vmatprep.subr.mxu0 0.0
    %92 = vmatpush1.msra.mxu0 %v46
    %93 = vmatprep.subr.mxu0 0.0
    %94 = vmatpush1.msra.mxu0 %v45
    %95 = vmatprep.subr.mxu0 0.0
    %96 = vmatpush2.msra.mxu0 0.0
    %97 = vmatprep.subr.mxu0 0.0
    %98 = vmatpush2.msra.mxu0 0.0
    %99 = vmatprep.subr.mxu0 0.0
    %100 = vmatpush2.msra.mxu0 0.0
    %101 = vmatprep.subr.mxu0 0.0
    %102 = vmatpush2.msra.mxu0 0.0
    %103 = vmatprep.subr.mxu0 0.0
    %104 = vmatpush2.msra.mxu0 0.0
    %105 = vmatprep.subr.mxu0 0.0
    %106 = vmatpush2.msra.mxu0 0.0
    %107 = vmatprep.subr.mxu0 0.0
    %108 = vmatpush2.msra.mxu0 0.0
    %109 = vmatprep.subr.mxu0 0.0
    %110 = vmatpush2.msra.mxu0 0.0
    %111 = vmatprep.subr.mxu0 0.0
    %112 = vmatpush2.msra.mxu0 0.0
    %113 = vmatprep.subr.mxu0 0.0
    %114 = vmatpush2.msra.mxu0 0.0
    %115 = vmatprep.subr.mxu0 0.0
    %116 = vmatpush2.msra.mxu0 0.0
    %117 = vmatprep.subr.mxu0 0.0
    %118 = vmatpush2.msra.mxu0 0.0
    %119 = vmatprep.subr.mxu0 0.0
    %120 = vmatpush2.msra.mxu0 0.0
    %121 = vmatprep.subr.mxu0 0.0
    %122 = vmatpush2.msra.mxu0 0.0
    %123 = vmatprep.subr.mxu0 0.0
    %124 = vmatpush2.msra.mxu0 0.0
    %125 = vmatprep.subr.mxu0 0.0
    %126 = vmatpush2.msra.mxu0 0.0
    %127 = vmatprep.mubr.f32.mxu0 0.0
    %128 = vmatmul.mubr.f32.gmra.mxu0 %v58
    %v129 = vpop.f32.mrf.mxu0
    %v130 = vadd.f32 %v54, %v129
    %v131 = vpop.f32.mrf.mxu0
    %132 = vmatprep.mubr.f32.mxu0 0.0
    %133 = vmatmul.mubr.f32.gmra.mxu0 %v61
    %v134 = vpop.f32.mrf.mxu0
    %v135 = vadd.f32 %v54, %v134
    %v136 = vpop.f32.mrf.mxu0
    %137 = vdwg.mxu0
    %vm138 = vcmask 785408
    %139 = vst.msk [vmem:[#allocation7] sm:$0xff] %vm138, %v130
    %140 = vst.msk [vmem:[#allocation7 + $0x8] sm:$0xff] %vm138, %v135
    // Predicated region
    $region22: #{tpu_custom_call.1} parent=1 // pred_check
      _
    $region23: #{tpu_custom_call.1} parent=1 // pred_check_branch
      %142 = sbr.rel (0) target = $region25
    $region24: #{tpu_custom_call.1} parent=1 // pred_region
      %s144 = ssub.s32 256, 256
      %145 = vsyncadd [#allocation4], %s144
      %s146 = sshll.u32 [#allocation7], 4
      %s147 = int_to_ptr.vmem [resolvable:$true] %s146
      %152 = dma.vmem_to_hbm [thread:$0]  %s147, 256, %s3, [#allocation4], 128, 128, 8
    $region25: #{tpu_custom_call.1} parent=1 // pred_fallthru
      _
    // Predicated region
    $region26: #{tpu_custom_call.1} parent=1 // pred_check
      _
    $region27: #{tpu_custom_call.1} parent=1 // pred_check_branch
      %154 = sbr.rel (0) target = $region29
    $region28: #{tpu_custom_call.1} parent=1 // pred_region
      %155 = dma.done [#allocation4], 256
    $region29: #{tpu_custom_call.1} parent=1 // pred_fallthru
      _
    %156 = vsyncpa [#allocation3], 1
    %157 = vsyncpa [#allocation6], 1
    %158 = vsyncpa [#allocation4], 1

</llo_original>
